<compile_context>
chip_gen: v5e
topology: v5e:2x2
jax: 0.10.0
libtpu: 0.0.40
codegen_flags: <defaults>
</compile_context>

<pallas_src>
import functools

import numpy as np

import jax
import jax.numpy as jnp
from jax.experimental import pallas as pl
from jax.experimental.pallas import tpu as pltpu


def _tv_kernel(x_ref, m_ref, o_ref, *, W, hw, n, tn, use_roll, need_row_mask):
    """One grid step: TN images (rows of length H*W) -> one pre-scaled partial.

    m_ref holds two full-width, pre-scaled boundary masks:
      m[0, c] = 1/count_h if flat column c has a valid vertical neighbour
                (c < (H-1)*W), else 0.
      m[1, c] = 1/count_w if flat column c has a valid horizontal neighbour
                (c % W != W-1), else 0.
    """
    x = x_ref[...].astype(jnp.float32)                     # (TN, H*W) f32 in-register

    if need_row_mask:
        # Last block may extend past the true number of images; zero those rows
        # with a select (the padded buffer region holds unspecified data).
        row = (jax.lax.broadcasted_iota(jnp.int32, (tn, 1), 0)
               + pl.program_id(0) * tn)
        x = jnp.where(row < n, x, 0.0)

    m = m_ref[...]                                         # (2, H*W) f32

    if use_roll:
        # Full-width rotated copies via the XLU; every tensor keeps the aligned
        # (TN, H*W) shape, and wrap-around columns are zeroed by the masks
        # after the image-axis fold (VPU adds, lane axis kept).
        vd = pltpu.roll(x, hw - W, axis=1) - x             # vd[:, c] = x[:, c+W] - x[:, c]
        hd = pltpu.roll(x, hw - 1, axis=1) - x             # hd[:, c] = x[:, c+1] - x[:, c]
        v_cols = jnp.sum(vd * vd, axis=0, keepdims=True)   # (1, H*W)
        h_cols = jnp.sum(hd * hd, axis=0, keepdims=True)   # (1, H*W)
        part = jnp.sum(v_cols * m[0:1, :] + h_cols * m[1:2, :])
    else:
        # Fallback for H*W not a multiple of 128: slice-based diffs (correct,
        # pays a small relayout); masks are sliced to the matching width.
        vd = x[:, W:] - x[:, :-W]                          # (TN, (H-1)*W)
        hd = x[:, 1:] - x[:, :-1]                          # (TN, H*W-1)
        v_cols = jnp.sum(vd * vd, axis=0, keepdims=True)
        h_cols = jnp.sum(hd * hd, axis=0, keepdims=True)
        part = (jnp.sum(v_cols * m[0:1, : hw - W])
                + jnp.sum(h_cols * m[1:2, : hw - 1]))

    # Lane-padded partial (scalar broadcast across 128 lanes) -> unmasked store.
    o_ref[...] = jnp.broadcast_to(part, (1, 1, 128)).astype(jnp.float32)


def _choose_block_rows(n, hw, itemsize):
    """Images (rows of the flat (n, H*W) view) per grid step."""
    lane_pad = -(-hw // 128) * 128
    pack = 8 * max(1, 4 // itemsize)           # sublane packing: 8 f32 / 16 bf16 / 32 int8
    # ~4 MiB of native-dtype HBM traffic per step (large-tile DMA regime).
    tn_hbm = (4 * 1024 * 1024) // max(1, hw * itemsize)
    # VMEM: 2x double-buffered native input block + ~3x f32 working set,
    # kept <= ~20 MiB so the 32 MiB scoped limit is also safe on v7x.
    per_row = 2 * lane_pad * itemsize + 3 * lane_pad * 4
    tn_vmem = (20 * 1024 * 1024) // per_row
    tn = max(1, min(tn_hbm, tn_vmem))
    if tn >= n:
        return n                                # single block covers everything
    # Multi-block: balance over an even number of blocks (both v7x TensorCores
    # get work), then round up to the dtype packing granularity.
    nblk = -(-n // tn)
    if nblk % 2:
        nblk += 1
    tn = -(-n // nblk)
    tn = max(pack, -(-tn // pack) * pack)
    if tn >= n:
        return n
    return tn


def tv_loss(x, block_n=None):
    """Total-variation loss, matching PyTorch TVLoss.forward:
        mean((x[:,:,1:,:]-x[:,:,:-1,:])**2) + mean((x[:,:,:,1:]-x[:,:,:,:-1])**2)

    x: (B, C, H, W). Returns a float32 scalar. `block_n` optionally forces the
    number of images per grid step (testing / tuning hook).
    """
    B, C, H, W = x.shape
    if H < 2 or W < 2:
        # PyTorch: .mean() of an empty diff tensor is NaN, which propagates.
        return jnp.full((), jnp.nan, dtype=jnp.float32)

    n = B * C
    hw = H * W
    x2 = x.reshape(n, hw)                       # free for contiguous NCHW input

    itemsize = jnp.dtype(x.dtype).itemsize
    pack = 8 * max(1, 4 // itemsize)
    if block_n is None:
        tn = _choose_block_rows(n, hw, itemsize)
    else:
        tn = max(1, min(int(block_n), n))
        if tn < n:                              # multi-block => packing-aligned rows
            tn = min(n, max(pack, (tn // pack) * pack))
    nblk = -(-n // tn)

    inv_h = 1.0 / float(n * (H - 1) * W)        # number of vertical diffs
    inv_w = 1.0 / float(n * H * (W - 1))        # number of horizontal diffs

    # Full-width (lane-aligned) boundary masks, pre-scaled by 1/count on the
    # host, so the kernel epilogue is one fused multiply-add + one reduction.
    col = np.arange(hw)
    masks = np.stack([
        (col < (H - 1) * W).astype(np.float32) * inv_h,     # vertical-diff columns
        ((col % W) != (W - 1)).astype(np.float32) * inv_w,  # horizontal-diff columns
    ])                                                      # (2, H*W) f32

    kernel = functools.partial(
        _tv_kernel, W=W, hw=hw, n=n, tn=tn,
        use_roll=(hw % 128 == 0),
        need_row_mask=(n % tn != 0))

    partials = pl.pallas_call(
        kernel,
        out_shape=jax.ShapeDtypeStruct((nblk, 1, 128), jnp.float32),
        grid_spec=pltpu.PrefetchScalarGridSpec(
            num_scalar_prefetch=0,
            grid=(nblk,),
            in_specs=[
                pl.BlockSpec((tn, hw), lambda i: (i, 0)),
                pl.BlockSpec((2, hw), lambda i: (0, 0)),   # constant index -> DMA'd once
            ],
            out_specs=pl.BlockSpec((1, 1, 128), lambda i: (i, 0, 0)),
        ),
        compiler_params=pltpu.CompilerParams(
            dimension_semantics=("parallel",),             # megacore-shardable on v7x
            vmem_limit_bytes=32 * 1024 * 1024,             # safe on v5e/v6e/v7x
        ),
    )(x2, masks)

    return jnp.sum(partials[:, 0, 0])


def tv_loss_ref(x):
    """Pure-JAX reference (mirrors the PyTorch forward)."""
    xf = x.astype(jnp.float32)
    h_tv = jnp.mean((xf[:, :, 1:, :] - xf[:, :, :-1, :]) ** 2)
    w_tv = jnp.mean((xf[:, :, :, 1:] - xf[:, :, :, :-1]) ** 2)
    return h_tv + w_tv


if __name__ == "__main__":
    key = jax.random.PRNGKey(0)
    k1, k2, k3 = jax.random.split(key, 3)

    tv = jax.jit(tv_loss)
    tv_blk8 = jax.jit(functools.partial(tv_loss, block_n=8))

    # Case 1: typical NCHW shape, lane-aligned H*W (roll fast path), one block.
    x1 = jax.random.normal(k1, (2, 4, 16, 16), dtype=jnp.float32)
    out1 = jax.block_until_ready(tv(x1))
    ref1 = jax.block_until_ready(tv_loss_ref(x1))
    assert jnp.allclose(out1, ref1, rtol=1e-5, atol=1e-5), (out1, ref1)

    # Case 2: odd spatial size (H*W % 128 != 0 -> slice fallback) with bf16
    # input kept bf16 through the DMA and upcast in-register.
    x2 = jax.random.normal(k2, (2, 3, 8, 12), dtype=jnp.bfloat16)
    out2 = jax.block_until_ready(tv(x2))
    ref2 = jax.block_until_ready(tv_loss_ref(x2))
    assert jnp.allclose(out2, ref2, rtol=1e-4, atol=1e-4), (out2, ref2)

    # Case 3: multi-block grid with a remainder (n=12, TN=8) to exercise the
    # in-kernel row masking that replaced the jnp.pad path.
    x3 = jax.random.normal(k3, (3, 4, 16, 16), dtype=jnp.float32)
    out3 = jax.block_until_ready(tv_blk8(x3))
    ref3 = jax.block_until_ready(tv_loss_ref(x3))
    assert jnp.allclose(out3, ref3, rtol=1e-5, atol=1e-5), (out3, ref3)

    print("KERNEL_OK")
</pallas_src>

<mosaic_0001>
module attributes {stable_mosaic.version = 11 : i64} {
  func.func @_tv_kernel(%arg0: i32, %arg1: memref<8x256xf32, #tpu.memory_space<vmem>>, %arg2: memref<2x256xf32, #tpu.memory_space<vmem>>, %arg3: memref<1x1x128xf32, #tpu.memory_space<vmem>>) attributes {dimension_semantics = [#tpu.dimension_semantics<parallel>], iteration_bounds = array<i64: 1>, scalar_prefetch = 0 : i64, scratch_operands = 0 : i64, tpu.core_type = #tpu.core_type<tc>, window_params = [{transform_indices = @transform_0, window_bounds = array<i64: 8, 256>}, {pipeline_mode = #tpu.pipeline_mode<synchronous>, transform_indices = @transform_1, window_bounds = array<i64: 2, 256>}, {transform_indices = @transform_2, window_bounds = array<i64: 1, 1, 128>}]} {
    %c0 = arith.constant 0 : index
    %c0_0 = arith.constant 0 : index
    %0 = vector.load %arg1[%c0, %c0_0] : memref<8x256xf32, #tpu.memory_space<vmem>>, vector<8x256xf32>
    %c0_1 = arith.constant 0 : index
    %c0_2 = arith.constant 0 : index
    %1 = vector.load %arg2[%c0_1, %c0_2] : memref<2x256xf32, #tpu.memory_space<vmem>>, vector<2x256xf32>
    %c240_i32 = arith.constant 240 : i32
    %2 = tpu.dynamic_rotate %0 by %c240_i32 dim 1 : vector<8x256xf32>, i32 -> vector<8x256xf32>
    %3 = arith.subf %2, %0 : vector<8x256xf32>
    %c255_i32 = arith.constant 255 : i32
    %4 = tpu.dynamic_rotate %0 by %c255_i32 dim 1 : vector<8x256xf32>, i32 -> vector<8x256xf32>
    %5 = arith.subf %4, %0 : vector<8x256xf32>
    %6 = arith.mulf %3, %3 : vector<8x256xf32>
    %cst = arith.constant dense<0.000000e+00> : vector<256xf32>
    %7 = vector.multi_reduction <add>, %6, %cst [0] : vector<8x256xf32> to vector<256xf32>
    %8 = vector.shape_cast %7 : vector<256xf32> to vector<1x256xf32>
    %9 = arith.mulf %5, %5 : vector<8x256xf32>
    %cst_3 = arith.constant dense<0.000000e+00> : vector<256xf32>
    %10 = vector.multi_reduction <add>, %9, %cst_3 [0] : vector<8x256xf32> to vector<256xf32>
    %11 = vector.shape_cast %10 : vector<256xf32> to vector<1x256xf32>
    %12 = vector.extract_strided_slice %1 {offsets = [0, 0], sizes = [1, 256], strides = [1, 1]} : vector<2x256xf32> to vector<1x256xf32>
    %13 = arith.mulf %8, %12 : vector<1x256xf32>
    %14 = vector.extract_strided_slice %1 {offsets = [1, 0], sizes = [1, 256], strides = [1, 1]} : vector<2x256xf32> to vector<1x256xf32>
    %15 = arith.mulf %11, %14 : vector<1x256xf32>
    %16 = arith.addf %13, %15 : vector<1x256xf32>
    %17 = vector.shape_cast %16 : vector<1x256xf32> to vector<1x1x256xf32>
    %cst_4 = arith.constant dense<0.000000e+00> : vector<1xf32>
    %18 = vector.multi_reduction <add>, %17, %cst_4 [1, 2] : vector<1x1x256xf32> to vector<1xf32>
    %19 = vector.shape_cast %18 : vector<1xf32> to vector<1x1x1xf32>
    %20 = vector.extract %19[0, 0, 0] : f32 from vector<1x1x1xf32>
    %21 = vector.broadcast %20 : f32 to vector<1x1x128xf32>
    %c0_5 = arith.constant 0 : index
    %c0_6 = arith.constant 0 : index
    %c0_7 = arith.constant 0 : index
    %22 = vector.load %arg3[%c0_5, %c0_6, %c0_7] : memref<1x1x128xf32, #tpu.memory_space<vmem>>, vector<1x1x128xf32>
    tpu.vector_store %arg3[%c0_5, %c0_6, %c0_7], %21 {strides = array<i32>} : memref<1x1x128xf32, #tpu.memory_space<vmem>>, vector<1x1x128xf32>,
    return
  }
  func.func @transform_0(%arg0: i32) -> (i32, i32) {
    %c0_i32 = arith.constant 0 : i32
    %c0_i32_0 = arith.constant 0 : i32
    return %arg0, %c0_i32 : i32, i32
  }
  func.func @transform_1(%arg0: i32) -> (i32, i32) {
    %c0_i32 = arith.constant 0 : i32
    %c0_i32_0 = arith.constant 0 : i32
    %c0_i32_1 = arith.constant 0 : i32
    return %c0_i32, %c0_i32_0 : i32, i32
  }
  func.func @transform_2(%arg0: i32) -> (i32, i32, i32) {
    %c0_i32 = arith.constant 0 : i32
    %c0_i32_0 = arith.constant 0 : i32
    %c0_i32_1 = arith.constant 0 : i32
    return %arg0, %c0_i32, %c0_i32_0 : i32, i32, i32
  }
}

</mosaic_0001>

<llo_original>
// kernel: tv_loss.1
$region0: #{tv_loss.1}
  #allocation0 [shape = 'u32[]', space=smem, size = 0x4, offset = 0x4, fixed_abs, tag = 'smem constant byte address 0x4 - core index']
  #allocation1 [shape = 'u32[72,128]{1,0:T(1,128)}', space=vmem, size = 0x9000, scoped, tag = 'internal scratch']
  %s0 = inlined_call_operand.vmem [shape: f32[8,256], index: 0, kind: input, shape index: {}]
  %s1 = inlined_call_operand.vmem [shape: f32[2,256], index: 1, kind: input, shape index: {}]
  %s2 = inlined_call_operand.hbm [shape: f32[1,1,128], index: 2, kind: output, shape index: {}]
  %s3 = sld [smem:[#allocation0]]
  $region18: #{tv_loss.1} parent=0
    _
  %s5 = ssub.s32 1, %s3
  %s6 = scalar_select 0, %s5, %s3
  $region1: #{tv_loss.1} parent=0
    #allocation2 [shape = 'u8[512]{0}', space=vmem, size = 0x400, scoped, tag = 'output window, operand 0, single buffered']
    #allocation3 [shape = 's32[1]{0}', space=sflag, size = 0x4, scoped, tag = 'scoped memory for tv_loss.1']
    %7 = vsyncpa [#allocation3], 0
    // Predicated region
    $region2: #{tv_loss.1} parent=1 // pred_check
      _
    $region3: #{tv_loss.1} parent=1 // pred_check_branch
      %9 = sbr.rel (0) target = $region5
    $region4: #{tv_loss.1} parent=1 // pred_region
      _
    $region5: #{tv_loss.1} parent=1 // pred_fallthru
      _
    // Predicated region
    $region6: #{tv_loss.1} parent=1 // pred_check
      _
    $region7: #{tv_loss.1} parent=1 // pred_check_branch
      %11 = sbr.rel (0) target = $region9
    $region8: #{tv_loss.1} parent=1 // pred_region
      _
    $region9: #{tv_loss.1} parent=1 // pred_fallthru
      _
    %v12 = vld [vmem:[%s0] sm:$0xff]
    %v13 = vld [vmem:[%s0 + $0x8] sm:$0xff]
    %v14 = vld [vmem:[%s1] sm:$0xf]
    %15 = vrot.lane.b32.xlu0 %v12, 112
    %v16 = vpop.permute.xlu0 %15
    %17 = vrot.lane.b32.xlu0 %v13, 112
    %v18 = vpop.permute.xlu0 %17
    %v19 = vlaneseq
    %v20 = vand.u32 %v19, 127
    %vm21 = vcmp.lt.s32.totalorder %v20, 112
    %v22 = vsel %vm21, %v16, %v18
    %v23 = vsel %vm21, %v18, %v16
    %v24 = vsub.f32 %v22, %v12
    %v25 = vsub.f32 %v23, %v13
    %26 = vrot.lane.b32.xlu0 %v12, 127
    %v27 = vpop.permute.xlu0 %26
    %28 = vrot.lane.b32.xlu0 %v13, 127
    %v29 = vpop.permute.xlu0 %28
    %vm30 = vcmp.lt.s32.totalorder %v20, 127
    %v31 = vsel %vm30, %v27, %v29
    %v32 = vsel %vm30, %v29, %v27
    %v33 = vsub.f32 %v31, %v12
    %v34 = vsub.f32 %v32, %v13
    %v35 = vmul.f32 %v24, %v24
    %v36 = vmul.f32 %v25, %v25
    %v37 = vrot.slane %v35, 4
    %v38 = vadd.f32 %v35, %v37
    %v39 = vrot.slane %v38, 2
    %v40 = vadd.f32 %v38, %v39
    %v41 = vrot.slane %v40, 1
    %v42 = vadd.f32 %v40, %v41
    %v43 = vrot.slane %v36, 4
    %v44 = vadd.f32 %v36, %v43
    %v45 = vrot.slane %v44, 2
    %v46 = vadd.f32 %v44, %v45
    %v47 = vrot.slane %v46, 1
    %v48 = vadd.f32 %v46, %v47
    %v49 = vmul.f32 %v33, %v33
    %v50 = vmul.f32 %v34, %v34
    %v51 = vrot.slane %v49, 4
    %v52 = vadd.f32 %v49, %v51
    %v53 = vrot.slane %v52, 2
    %v54 = vadd.f32 %v52, %v53
    %v55 = vrot.slane %v54, 1
    %v56 = vadd.f32 %v54, %v55
    %v57 = vrot.slane %v50, 4
    %v58 = vadd.f32 %v50, %v57
    %v59 = vrot.slane %v58, 2
    %v60 = vadd.f32 %v58, %v59
    %v61 = vrot.slane %v60, 1
    %v62 = vadd.f32 %v60, %v61
    %v64 = vperm.slane %v14, 0
    %v65 = vperm.slane %v14, 2
    %v68 = vmul.f32 %v42, %v64
    %v69 = vmul.f32 %v48, %v65
    %v70 = vperm.slane %v14, 1
    %v71 = vperm.slane %v14, 3
    %v74 = vmul.f32 %v56, %v70
    %v75 = vmul.f32 %v62, %v71
    %v76 = vadd.f32 %v68, %v74
    %v77 = vadd.f32 %v69, %v75
    %vm78 = vcmask 1040384
    %v79 = vsel %vm78, %v76, 0.0
    %v80 = vsel %vm78, %v77, 0.0
    %v81 = vadd.f32 %v79, %v80
    %82 = vadd.xlane.f32.xlu0 %v81
    %v83 = vpop.xlane.xlu0 %82
    %v84 = vrot.slane %v83, 4
    %v85 = vadd.f32 %v83, %v84
    %v86 = vrot.slane %v85, 2
    %v87 = vadd.f32 %v85, %v86
    %v88 = vrot.slane %v87, 1
    %v89 = vadd.f32 %v87, %v88
    %s90 = vtos %v89
    %v91 = vstv %s90
    %92 = vst [vmem:[#allocation2] sm:$0x1] %v91
    // Predicated region
    $region10: #{tv_loss.1} parent=1 // pred_check
      _
    $region11: #{tv_loss.1} parent=1 // pred_check_branch
      %94 = sbr.rel (0) target = $region13
    $region12: #{tv_loss.1} parent=1 // pred_region
      %96 = vsyncadd [#allocation3], 0
      %s98 = sshll.u32 [#allocation2], 4
      %s99 = int_to_ptr.vmem [resolvable:$true] %s98
      %s100 = sshll.u32 %s2, 4
      %s101 = int_to_ptr.hbm [resolvable:$true] %s100
      %103 = dma.vmem_to_hbm [thread:$0]  %s99, 16, %s101, [#allocation3]
    $region13: #{tv_loss.1} parent=1 // pred_fallthru
      _
    // Predicated region
    $region14: #{tv_loss.1} parent=1 // pred_check
      _
    $region15: #{tv_loss.1} parent=1 // pred_check_branch
      %105 = sbr.rel (0) target = $region17
    $region16: #{tv_loss.1} parent=1 // pred_region
      %107 = dma.done [#allocation3], 16
    $region17: #{tv_loss.1} parent=1 // pred_fallthru
      _
    %108 = vsyncpa [#allocation3], 1

</llo_original>
